<compile_context>
chip_gen: v6e
topology: v6e:2x2x1
jax: 0.10.0
libtpu: 0.0.40
codegen_flags: <defaults>
</compile_context>

<pallas_src>
import math

import jax
import jax.numpy as jnp
from jax.experimental import pallas as pl
from jax.experimental.pallas import tpu as pltpu


def _round_up(x, m):
    return ((x + m - 1) // m) * m


def _cdiv(a, b):
    return -(-a // b)


def _sublane_multiple(dtype):
    # f32 -> 8 sublanes per vreg, bf16 -> 16, int8/fp8 -> 32 (sublane packing).
    return max(8, 32 // max(1, jnp.dtype(dtype).itemsize))


def _chip_budget():
    """Returns (scoped-VMEM ceiling we are willing to request, TCs per device)."""
    kind = ""
    try:
        kind = jax.devices()[0].device_kind.lower()
    except Exception:
        pass
    vmem_phys = None
    try:
        info = pltpu.get_tpu_info()
        vmem_phys = int(getattr(info, "vmem_capacity_bytes", 0)) or None
    except Exception:
        pass
    if vmem_phys is None:
        # v5e/v6e: 128 MiB physical VMEM; v7x (and unknown): assume 64 MiB/TC.
        vmem_phys = (128 << 20) if ("v5" in kind or "v6" in kind) else (64 << 20)
    num_tc = 2 if ("v7" in kind or "tpu7" in kind) else 1
    if vmem_phys >= (96 << 20):
        limit_cap = 112 << 20            # aggressive on 128 MiB chips (v5e/v6e)
    else:
        limit_cap = 48 << 20             # conservative under v7x's 64 MiB/TC
    return limit_cap, num_tc


def _lora_kernel(alpha_ref, x_ref, a_ref, b_ref, o_ref):
    # alpha_ref: (1,) f32 in SMEM
    # x_ref: (tm, Kin), a_ref: (Kin, Kr), b_ref: (Kr, Nout), o_ref: (tm, Nout)
    xa = jnp.dot(x_ref[...], a_ref[...], preferred_element_type=jnp.float32)
    # Scale the narrow (tm, Kr) low-rank intermediate instead of the wide
    # (tm, Nout) result: far fewer VPU multiplies, and the scale stays in f32.
    xa = xa * alpha_ref[0]
    b = b_ref[...]
    if b.dtype != jnp.float32:
        b = b.astype(jnp.float32)   # tiny tile; keeps the second dot f32-accurate
    out = jnp.dot(xa, b, preferred_element_type=jnp.float32)
    o_ref[...] = out.astype(o_ref.dtype)


def lora_forward(x, A, B, alpha, *, compute_dtype=None, out_dtype=None,
                 tm_rows=None):
    """alpha * (x @ A @ B).  x: (N, in_dim), A: (in_dim, rank), B: (rank, out_dim)."""
    N, in_dim = x.shape
    in_dim_a, rank = A.shape
    rank_b, out_dim = B.shape
    assert in_dim == in_dim_a and rank == rank_b

    compute_dtype = jnp.dtype(compute_dtype or x.dtype)
    out_dtype = jnp.dtype(out_dtype or x.dtype)
    cbytes = compute_dtype.itemsize
    obytes = out_dtype.itemsize
    sub = max(_sublane_multiple(compute_dtype), _sublane_multiple(out_dtype))

    # ---- lane-dense output strategy -----------------------------------------
    A_c = A.astype(compute_dtype)
    B_c = B.astype(compute_dtype)
    p = 1
    col_pad = 0
    if out_dim % 128 != 0:
        p_try = 128 // math.gcd(out_dim, 128)
        bd_bytes = p_try * p_try * (in_dim * rank + rank * out_dim) * cbytes
        if bd_bytes <= (4 << 20):
            p = p_try
        elif out_dim >= 64:
            # kron blow-up too large: keep stores lane-dense by zero-padding
            # B's columns to the next multiple of 128 (<= 2x output traffic).
            col_pad = _round_up(out_dim, 128) - out_dim
        # else: rare corner -- accept masked partial stores.
    if p > 1:
        eye = jnp.eye(p, dtype=compute_dtype)
        A_c = jnp.kron(eye, A_c)          # (p*in_dim, p*rank), block diagonal
        B_c = jnp.kron(eye, B_c)          # (p*rank, p*out_dim), block diagonal
    elif col_pad:
        B_c = jnp.pad(B_c, ((0, 0), (0, col_pad)))
    k_in, k_r = p * in_dim, p * rank
    n_out = p * out_dim + col_pad

    # ---- packed rows; pad only to a multiple of p (never to the tile size) ---
    x_c = x.astype(compute_dtype)
    if p > 1 and N % p != 0:
        x_c = jnp.pad(x_c, ((0, p - N % p), (0, 0)))
    n_rows = x_c.shape[0] // p
    x_packed = x_c.reshape(n_rows, k_in)   # row-major: bit-identical relayout

    # ---- generation-gated row-tile selection ---------------------------------
    limit_cap, num_tc = _chip_budget()
    row_bytes = k_in * cbytes + n_out * obytes             # x row + out row
    ab_bytes = 2 * (int(A_c.size) + int(B_c.size)) * cbytes  # residents, 2-buffered
    margin = 6 << 20                                        # compiler scratch etc.
    pair_cap = max(1 << 20, (limit_cap - ab_bytes - margin) // 2)
    gen_pair_target = (40 << 20) if limit_cap >= (96 << 20) else (18 << 20)
    pair_budget = min(gen_pair_target, pair_cap)            # one x-tile + out-tile
    if tm_rows is not None:
        tm = _round_up(max(1, tm_rows // p), sub)
    else:
        tm = max(sub, (pair_budget // row_bytes) // sub * sub)
    tm = min(tm, _round_up(n_rows, sub))
    steps = _cdiv(n_rows, tm)
    # v7x has 2 TensorCores sharing the "parallel" grid axis: keep the step
    # count even (and >= 2) so the HBM-bound work splits evenly across cores.
    # Single-TC chips (v5e/v6e) are not split: their grid is a serial loop.
    if tm_rows is None and num_tc > 1 and n_rows > sub and steps % 2 == 1:
        tm = max(sub, _round_up(_cdiv(n_rows, steps + 1), sub))
        steps = _cdiv(n_rows, tm)
    grid = (steps,)

    tile_need = 2 * tm * row_bytes + ab_bytes               # double-buffered tiles
    vmem_limit = int(min(limit_cap, max(32 << 20, tile_need + margin)))

    alpha_arr = jnp.asarray([alpha], dtype=jnp.float32)     # SMEM scalar

    out_packed = pl.pallas_call(
        _lora_kernel,
        out_shape=jax.ShapeDtypeStruct((n_rows, n_out), out_dtype),
        grid=grid,
        in_specs=[
            pl.BlockSpec(memory_space=pltpu.MemorySpace.SMEM),   # alpha (1,)
            pl.BlockSpec((tm, k_in), lambda i: (i, 0)),          # x row tile
            pl.BlockSpec((k_in, k_r), lambda i: (0, 0)),         # A (resident)
            pl.BlockSpec((k_r, n_out), lambda i: (0, 0)),        # B (resident)
        ],
        out_specs=pl.BlockSpec((tm, n_out), lambda i: (i, 0)),
        compiler_params=pltpu.CompilerParams(
            # "parallel" shards the row axis across TensorCores on multi-TC
            # chips; switch to pltpu.CORE_PARALLEL if profiling shows no split.
            dimension_semantics=("parallel",),
            vmem_limit_bytes=vmem_limit,
        ),
    )(alpha_arr, x_packed, A_c, B_c)

    out = out_packed.reshape(n_rows * p, n_out // p)
    if n_out // p != out_dim:
        out = out[:, :out_dim]
    if out.shape[0] != N:
        out = out[:N]
    return out


if __name__ == "__main__":
    # Shapes consistent with LoRALayer(in_dim=32, out_dim=32, rank=4, alpha=2.0).
    N, in_dim, out_dim, rank = 128, 32, 32, 4
    alpha = 2.0

    key = jax.random.PRNGKey(0)
    kx, ka, kb, kx2 = jax.random.split(key, 4)

    # Module-faithful init: A ~ randn(in_dim, rank) / sqrt(rank), B = zeros.
    std_dev = 1.0 / math.sqrt(rank)
    A = jax.random.normal(ka, (in_dim, rank), dtype=jnp.float32) * std_dev
    B0 = jnp.zeros((rank, out_dim), dtype=jnp.float32)
    x = jax.random.normal(kx, (N, in_dim), dtype=jnp.float32)

    # 1) Faithful init (B = 0): output must match the (zero) reference.
    out0 = jax.block_until_ready(lora_forward(x, A, B0, alpha))
    assert out0.shape == (N, out_dim)
    assert jnp.allclose(out0, alpha * (x @ A @ B0), atol=1e-6)

    # 2) Non-zero B (as after LoRA training): verify the math.
    B1 = jax.random.normal(kb, (rank, out_dim), dtype=jnp.float32)
    out1 = jax.block_until_ready(lora_forward(x, A, B1, alpha))
    ref1 = alpha * (x @ A @ B1)
    assert jnp.allclose(out1, ref1, atol=1e-4, rtol=1e-4)

    # 3) Ragged N=97: exercises the pad-to-p path (97 % 4 != 0) and the
    #    ceil-div grid with a masked overhanging last block (no tile-size pad).
    x2 = jax.random.normal(kx2, (97, in_dim), dtype=jnp.float32)
    out2 = jax.block_until_ready(lora_forward(x2, A, B1, alpha))
    ref2 = alpha * (x2 @ A @ B1)
    assert out2.shape == (97, out_dim)
    assert jnp.allclose(out2, ref2, atol=1e-4, rtol=1e-4)

    # 4) bf16 compute path (halves x/A/B HBM traffic; f32 accumulation in both dots).
    out3 = jax.block_until_ready(
        lora_forward(x, A, B1, alpha,
                     compute_dtype=jnp.bfloat16, out_dtype=jnp.float32))
    assert jnp.allclose(out3, ref1, atol=0.25, rtol=0.03)

    # 5) Lane-aligned out_dim (p=1 path) with bf16 output writeback.
    kb2, _ = jax.random.split(kb)
    B_wide = jax.random.normal(kb2, (rank, 128), dtype=jnp.float32)
    out4 = jax.block_until_ready(
        lora_forward(x, A, B_wide, alpha, out_dtype=jnp.bfloat16))
    ref4 = alpha * (x @ A @ B_wide)
    assert out4.dtype == jnp.bfloat16
    assert jnp.allclose(out4.astype(jnp.float32), ref4, atol=0.25, rtol=0.03)

    print("KERNEL_OK")
</pallas_src>

<mosaic_0001>
module attributes {stable_mosaic.version = 11 : i64} {
  func.func @_lora_kernel(%arg0: i32, %arg1: memref<1xf32, #tpu.memory_space<smem>>, %arg2: memref<32x128xf32, #tpu.memory_space<vmem>>, %arg3: memref<128x16xf32, #tpu.memory_space<vmem>>, %arg4: memref<16x128xf32, #tpu.memory_space<vmem>>, %arg5: memref<32x128xf32, #tpu.memory_space<vmem>>) attributes {dimension_semantics = [#tpu.dimension_semantics<parallel>], iteration_bounds = array<i64: 1>, scalar_prefetch = 0 : i64, scratch_operands = 0 : i64, tpu.core_type = #tpu.core_type<tc>, window_params = [{transform_indices = @transform_0, window_bounds = array<i64: 1>}, {transform_indices = @transform_1, window_bounds = array<i64: 32, 128>}, {pipeline_mode = #tpu.pipeline_mode<synchronous>, transform_indices = @transform_2, window_bounds = array<i64: 128, 16>}, {pipeline_mode = #tpu.pipeline_mode<synchronous>, transform_indices = @transform_3, window_bounds = array<i64: 16, 128>}, {transform_indices = @transform_4, window_bounds = array<i64: 32, 128>}]} {
    %c0 = arith.constant 0 : index
    %c0_0 = arith.constant 0 : index
    %0 = vector.load %arg2[%c0, %c0_0] : memref<32x128xf32, #tpu.memory_space<vmem>>, vector<32x128xf32>
    %c0_1 = arith.constant 0 : index
    %c0_2 = arith.constant 0 : index
    %1 = vector.load %arg3[%c0_1, %c0_2] : memref<128x16xf32, #tpu.memory_space<vmem>>, vector<128x16xf32>
    %cst = arith.constant dense<0.000000e+00> : vector<32x16xf32>
    %2 = tpu.matmul %0, %1, %cst {dimension_numbers = #tpu.dot_dimension_numbers<[1], [0], [0], [1], [0, 0, 1, 1], [], []>} : vector<32x128xf32>, vector<128x16xf32>, vector<32x16xf32> -> vector<32x16xf32>
    %c0_3 = arith.constant 0 : index
    %3 = memref.load %arg1[%c0_3] : memref<1xf32, #tpu.memory_space<smem>>
    %4 = vector.broadcast %3 : f32 to vector<32x16xf32>
    %5 = arith.mulf %2, %4 : vector<32x16xf32>
    %c0_4 = arith.constant 0 : index
    %c0_5 = arith.constant 0 : index
    %6 = vector.load %arg4[%c0_4, %c0_5] : memref<16x128xf32, #tpu.memory_space<vmem>>, vector<16x128xf32>
    %cst_6 = arith.constant dense<0.000000e+00> : vector<32x128xf32>
    %7 = tpu.matmul %5, %6, %cst_6 {dimension_numbers = #tpu.dot_dimension_numbers<[1], [0], [0], [1], [0, 0, 1, 1], [], []>} : vector<32x16xf32>, vector<16x128xf32>, vector<32x128xf32> -> vector<32x128xf32>
    %c0_7 = arith.constant 0 : index
    %c0_8 = arith.constant 0 : index
    %8 = vector.load %arg5[%c0_7, %c0_8] : memref<32x128xf32, #tpu.memory_space<vmem>>, vector<32x128xf32>
    tpu.vector_store %arg5[%c0_7, %c0_8], %7 {strides = array<i32>} : memref<32x128xf32, #tpu.memory_space<vmem>>, vector<32x128xf32>,
    return
  }
  func.func @transform_0(%arg0: i32) -> i32 {
    %c0_i32 = arith.constant 0 : i32
    %c0_i32_0 = arith.constant 0 : i32
    return %c0_i32 : i32
  }
  func.func @transform_1(%arg0: i32) -> (i32, i32) {
    %c0_i32 = arith.constant 0 : i32
    %c0_i32_0 = arith.constant 0 : i32
    return %arg0, %c0_i32 : i32, i32
  }
  func.func @transform_2(%arg0: i32) -> (i32, i32) {
    %c0_i32 = arith.constant 0 : i32
    %c0_i32_0 = arith.constant 0 : i32
    %c0_i32_1 = arith.constant 0 : i32
    return %c0_i32, %c0_i32_0 : i32, i32
  }
  func.func @transform_3(%arg0: i32) -> (i32, i32) {
    %c0_i32 = arith.constant 0 : i32
    %c0_i32_0 = arith.constant 0 : i32
    %c0_i32_1 = arith.constant 0 : i32
    return %c0_i32, %c0_i32_0 : i32, i32
  }
  func.func @transform_4(%arg0: i32) -> (i32, i32) {
    %c0_i32 = arith.constant 0 : i32
    %c0_i32_0 = arith.constant 0 : i32
    return %arg0, %c0_i32 : i32, i32
  }
}

</mosaic_0001>

<llo_original>
// kernel: tpu_custom_call.1
$region0: #{tpu_custom_call.1}
  #allocation0 [shape = 'u32[]', space=smem, size = 0x4, offset = 0x4, fixed_abs, tag = 'smem constant byte address 0x4 - core index']
  #allocation1 [shape = 'u32[144,128]{1,0:T(1,128)}', space=vmem, size = 0x12000, scoped, tag = 'internal scratch']
  #allocation2 [shape = 'f32[1]{0:T(128)S(6)}', space=smem, size = 0x200, scoped, tag = 'scoped memory for tpu_custom_call.1']
  %s0 = inlined_call_operand.<no memory space> [shape: f32[1], index: 0, kind: input, shape index: {}]
  %s1 = inlined_call_operand.vmem [shape: f32[32,128], index: 1, kind: input, shape index: {}]
  %s2 = inlined_call_operand.vmem [shape: f32[128,16], index: 2, kind: input, shape index: {}]
  %s3 = inlined_call_operand.vmem [shape: f32[16,128], index: 3, kind: input, shape index: {}]
  %s4 = inlined_call_operand.hbm [shape: f32[32,128], index: 4, kind: output, shape index: {}]
  %s5 = sld [smem:[#allocation0]]
  $region26: #{tpu_custom_call.1} parent=0
    _
  %s7 = ssub.s32 1, %s5
  %s8 = scalar_select 0, %s7, %s5
  %9 = sst [smem:[#allocation2]] %s0
  $region1: #{tpu_custom_call.1} parent=0
    #allocation3 [shape = 'u8[16384]{0}', space=vmem, size = 0x4000, scoped, tag = 'output window, operand 0, single buffered']
    #allocation4 [shape = 's32[1]{0}', space=sflag, size = 0x4, scoped, tag = 'scoped memory for tpu_custom_call.1']
    %10 = vsyncpa [#allocation4], 0
    // Predicated region
    $region2: #{tpu_custom_call.1} parent=1 // pred_check
      _
    $region3: #{tpu_custom_call.1} parent=1 // pred_check_branch
      %12 = sbr.rel (0) target = $region5
    $region4: #{tpu_custom_call.1} parent=1 // pred_region
      _
    $region5: #{tpu_custom_call.1} parent=1 // pred_fallthru
      _
    // Predicated region
    $region6: #{tpu_custom_call.1} parent=1 // pred_check
      _
    $region7: #{tpu_custom_call.1} parent=1 // pred_check_branch
      %14 = sbr.rel (0) target = $region9
    $region8: #{tpu_custom_call.1} parent=1 // pred_region
      _
    $region9: #{tpu_custom_call.1} parent=1 // pred_fallthru
      _
    // Predicated region
    $region10: #{tpu_custom_call.1} parent=1 // pred_check
      _
    $region11: #{tpu_custom_call.1} parent=1 // pred_check_branch
      %16 = sbr.rel (0) target = $region13
    $region12: #{tpu_custom_call.1} parent=1 // pred_region
      _
    $region13: #{tpu_custom_call.1} parent=1 // pred_fallthru
      _
    // Predicated region
    $region14: #{tpu_custom_call.1} parent=1 // pred_check
      _
    $region15: #{tpu_custom_call.1} parent=1 // pred_check_branch
      %18 = sbr.rel (0) target = $region17
    $region16: #{tpu_custom_call.1} parent=1 // pred_region
      _
    $region17: #{tpu_custom_call.1} parent=1 // pred_fallthru
      _
    %v19 = vld [vmem:[%s1] sm:$0xff]
    %v20 = vld [vmem:[%s1 + $0x8] sm:$0xff]
    %v21 = vld [vmem:[%s1 + $0x10] sm:$0xff]
    %v22 = vld [vmem:[%s1 + $0x18] sm:$0xff]
    %v23 = vld [vmem:[%s2] sm:$0xff]
    %v24 = vld [vmem:[%s2 + $0x8] sm:$0xff]
    %v25 = vld [vmem:[%s2 + $0x10] sm:$0xff]
    %v26 = vld [vmem:[%s2 + $0x18] sm:$0xff]
    %v27 = vld [vmem:[%s2 + $0x20] sm:$0xff]
    %v28 = vld [vmem:[%s2 + $0x28] sm:$0xff]
    %v29 = vld [vmem:[%s2 + $0x30] sm:$0xff]
    %v30 = vld [vmem:[%s2 + $0x38] sm:$0xff]
    %v31 = vld [vmem:[%s2 + $0x40] sm:$0xff]
    %v32 = vld [vmem:[%s2 + $0x48] sm:$0xff]
    %v33 = vld [vmem:[%s2 + $0x50] sm:$0xff]
    %v34 = vld [vmem:[%s2 + $0x58] sm:$0xff]
    %v35 = vld [vmem:[%s2 + $0x60] sm:$0xff]
    %v36 = vld [vmem:[%s2 + $0x68] sm:$0xff]
    %v37 = vld [vmem:[%s2 + $0x70] sm:$0xff]
    %v38 = vld [vmem:[%s2 + $0x78] sm:$0xff]
    %39 = vmatprep.subr.mxu0 0.0
    %40 = vmatpush1.msra.mxu0 %v38
    %41 = vmatprep.subr.mxu0 0.0
    %42 = vmatpush1.msra.mxu0 %v37
    %43 = vmatprep.subr.mxu0 0.0
    %44 = vmatpush1.msra.mxu0 %v36
    %45 = vmatprep.subr.mxu0 0.0
    %46 = vmatpush1.msra.mxu0 %v35
    %47 = vmatprep.subr.mxu0 0.0
    %48 = vmatpush1.msra.mxu0 %v34
    %49 = vmatprep.subr.mxu0 0.0
    %50 = vmatpush1.msra.mxu0 %v33
    %51 = vmatprep.subr.mxu0 0.0
    %52 = vmatpush1.msra.mxu0 %v32
    %53 = vmatprep.subr.mxu0 0.0
    %54 = vmatpush1.msra.mxu0 %v31
    %55 = vmatprep.subr.mxu0 0.0
    %56 = vmatpush1.msra.mxu0 %v30
    %57 = vmatprep.subr.mxu0 0.0
    %58 = vmatpush1.msra.mxu0 %v29
    %59 = vmatprep.subr.mxu0 0.0
    %60 = vmatpush1.msra.mxu0 %v28
    %61 = vmatprep.subr.mxu0 0.0
    %62 = vmatpush1.msra.mxu0 %v27
    %63 = vmatprep.subr.mxu0 0.0
    %64 = vmatpush1.msra.mxu0 %v26
    %65 = vmatprep.subr.mxu0 0.0
    %66 = vmatpush1.msra.mxu0 %v25
    %67 = vmatprep.subr.mxu0 0.0
    %68 = vmatpush1.msra.mxu0 %v24
    %69 = vmatprep.subr.mxu0 0.0
    %70 = vmatpush1.msra.mxu0 %v23
    %71 = vmatprep.subr.mxu0 0.0
    %72 = vmatpush2.msra.mxu0 0.0
    %73 = vmatprep.subr.mxu0 0.0
    %74 = vmatpush2.msra.mxu0 0.0
    %75 = vmatprep.subr.mxu0 0.0
    %76 = vmatpush2.msra.mxu0 0.0
    %77 = vmatprep.subr.mxu0 0.0
    %78 = vmatpush2.msra.mxu0 0.0
    %79 = vmatprep.subr.mxu0 0.0
    %80 = vmatpush2.msra.mxu0 0.0
    %81 = vmatprep.subr.mxu0 0.0
    %82 = vmatpush2.msra.mxu0 0.0
    %83 = vmatprep.subr.mxu0 0.0
    %84 = vmatpush2.msra.mxu0 0.0
    %85 = vmatprep.subr.mxu0 0.0
    %86 = vmatpush2.msra.mxu0 0.0
    %87 = vmatprep.subr.mxu0 0.0
    %88 = vmatpush2.msra.mxu0 0.0
    %89 = vmatprep.subr.mxu0 0.0
    %90 = vmatpush2.msra.mxu0 0.0
    %91 = vmatprep.subr.mxu0 0.0
    %92 = vmatpush2.msra.mxu0 0.0
    %93 = vmatprep.subr.mxu0 0.0
    %94 = vmatpush2.msra.mxu0 0.0
    %95 = vmatprep.subr.mxu0 0.0
    %96 = vmatpush2.msra.mxu0 0.0
    %97 = vmatprep.subr.mxu0 0.0
    %98 = vmatpush2.msra.mxu0 0.0
    %99 = vmatprep.subr.mxu0 0.0
    %100 = vmatpush2.msra.mxu0 0.0
    %101 = vmatprep.subr.mxu0 0.0
    %102 = vmatpush2.msra.mxu0 0.0
    %103 = vmatprep.mubr.f32.mxu0 0.0
    %104 = vmatmul.mubr.f32.gmra.mxu0 %v19
    %v105 = vpop.f32.mrf.mxu0
    %v106 = vadd.f32 0.0, %v105
    %v107 = vpop.f32.mrf.mxu0
    %108 = vmatprep.mubr.f32.mxu0 0.0
    %109 = vmatmul.mubr.f32.gmra.mxu0 %v20
    %v110 = vpop.f32.mrf.mxu0
    %v111 = vadd.f32 0.0, %v110
    %v112 = vpop.f32.mrf.mxu0
    %113 = vmatprep.mubr.f32.mxu0 0.0
    %114 = vmatmul.mubr.f32.gmra.mxu0 %v21
    %v115 = vpop.f32.mrf.mxu0
    %v116 = vadd.f32 0.0, %v115
    %v117 = vpop.f32.mrf.mxu0
    %118 = vmatprep.mubr.f32.mxu0 0.0
    %119 = vmatmul.mubr.f32.gmra.mxu0 %v22
    %v120 = vpop.f32.mrf.mxu0
    %v121 = vadd.f32 0.0, %v120
    %v122 = vpop.f32.mrf.mxu0
    %123 = vdwg.mxu0
    %s124 = sld [smem:[#allocation2]]
    %v125 = vstv %s124
    %v126 = vmul.f32 %v106, %v125
    %v127 = vmul.f32 %v111, %v125
    %v128 = vmul.f32 %v116, %v125
    %v129 = vmul.f32 %v121, %v125
    %v130 = vld [vmem:[%s3] sm:$0xff]
    %v131 = vld [vmem:[%s3 + $0x8] sm:$0xff]
    %vm132 = vcmask 130048
    %v134 = vsel %vm132, %v126, 0
    %v137 = vsel %vm132, %v127, 0
    %v140 = vsel %vm132, %v128, 0
    %v143 = vsel %vm132, %v129, 0
    %145 = vmatprep.subr.mxu0 0.0
    %146 = vmatpush1.msra.mxu0 0.0
    %147 = vmatprep.subr.mxu0 0.0
    %148 = vmatpush1.msra.mxu0 0.0
    %149 = vmatprep.subr.mxu0 0.0
    %150 = vmatpush1.msra.mxu0 0.0
    %151 = vmatprep.subr.mxu0 0.0
    %152 = vmatpush1.msra.mxu0 0.0
    %153 = vmatprep.subr.mxu0 0.0
    %154 = vmatpush1.msra.mxu0 0.0
    %155 = vmatprep.subr.mxu0 0.0
    %156 = vmatpush1.msra.mxu0 0.0
    %157 = vmatprep.subr.mxu0 0.0
    %158 = vmatpush1.msra.mxu0 0.0
    %159 = vmatprep.subr.mxu0 0.0
    %160 = vmatpush1.msra.mxu0 0.0
    %161 = vmatprep.subr.mxu0 0.0
    %162 = vmatpush1.msra.mxu0 0.0
    %163 = vmatprep.subr.mxu0 0.0
    %164 = vmatpush1.msra.mxu0 0.0
    %165 = vmatprep.subr.mxu0 0.0
    %166 = vmatpush1.msra.mxu0 0.0
    %167 = vmatprep.subr.mxu0 0.0
    %168 = vmatpush1.msra.mxu0 0.0
    %169 = vmatprep.subr.mxu0 0.0
    %170 = vmatpush1.msra.mxu0 0.0
    %171 = vmatprep.subr.mxu0 0.0
    %172 = vmatpush1.msra.mxu0 0.0
    %173 = vmatprep.subr.mxu0 0.0
    %174 = vmatpush1.msra.mxu0 %v131
    %175 = vmatprep.subr.mxu0 0.0
    %176 = vmatpush1.msra.mxu0 %v130
    %177 = vmatprep.subr.mxu0 0.0
    %178 = vmatpush2.msra.mxu0 0.0
    %179 = vmatprep.subr.mxu0 0.0
    %180 = vmatpush2.msra.mxu0 0.0
    %181 = vmatprep.subr.mxu0 0.0
    %182 = vmatpush2.msra.mxu0 0.0
    %183 = vmatprep.subr.mxu0 0.0
    %184 = vmatpush2.msra.mxu0 0.0
    %185 = vmatprep.subr.mxu0 0.0
    %186 = vmatpush2.msra.mxu0 0.0
    %187 = vmatprep.subr.mxu0 0.0
    %188 = vmatpush2.msra.mxu0 0.0
    %189 = vmatprep.subr.mxu0 0.0
    %190 = vmatpush2.msra.mxu0 0.0
    %191 = vmatprep.subr.mxu0 0.0
    %192 = vmatpush2.msra.mxu0 0.0
    %193 = vmatprep.subr.mxu0 0.0
    %194 = vmatpush2.msra.mxu0 0.0
    %195 = vmatprep.subr.mxu0 0.0
    %196 = vmatpush2.msra.mxu0 0.0
    %197 = vmatprep.subr.mxu0 0.0
    %198 = vmatpush2.msra.mxu0 0.0
    %199 = vmatprep.subr.mxu0 0.0
    %200 = vmatpush2.msra.mxu0 0.0
    %201 = vmatprep.subr.mxu0 0.0
    %202 = vmatpush2.msra.mxu0 0.0
    %203 = vmatprep.subr.mxu0 0.0
    %204 = vmatpush2.msra.mxu0 0.0
    %205 = vmatprep.subr.mxu0 0.0
    %206 = vmatpush2.msra.mxu0 0.0
    %207 = vmatprep.subr.mxu0 0.0
    %208 = vmatpush2.msra.mxu0 0.0
    %209 = vmatprep.mubr.f32.mxu0 0.0
    %210 = vmatmul.mubr.f32.gmra.mxu0 %v134
    %v211 = vpop.f32.mrf.mxu0
    %v212 = vadd.f32 0.0, %v211
    %v213 = vpop.f32.mrf.mxu0
    %214 = vmatprep.mubr.f32.mxu0 0.0
    %215 = vmatmul.mubr.f32.gmra.mxu0 %v137
    %v216 = vpop.f32.mrf.mxu0
    %v217 = vadd.f32 0.0, %v216
    %v218 = vpop.f32.mrf.mxu0
    %219 = vmatprep.mubr.f32.mxu0 0.0
    %220 = vmatmul.mubr.f32.gmra.mxu0 %v140
    %v221 = vpop.f32.mrf.mxu0
    %v222 = vadd.f32 0.0, %v221
    %v223 = vpop.f32.mrf.mxu0
    %224 = vmatprep.mubr.f32.mxu0 0.0
    %225 = vmatmul.mubr.f32.gmra.mxu0 %v143
    %v226 = vpop.f32.mrf.mxu0
    %v227 = vadd.f32 0.0, %v226
    %v228 = vpop.f32.mrf.mxu0
    %229 = vdwg.mxu0
    %230 = vst [vmem:[#allocation3] sm:$0xff] %v212
    %231 = vst [vmem:[#allocation3 + $0x8] sm:$0xff] %v217
    %232 = vst [vmem:[#allocation3 + $0x10] sm:$0xff] %v222
    %233 = vst [vmem:[#allocation3 + $0x18] sm:$0xff] %v227
    // Predicated region
    $region18: #{tpu_custom_call.1} parent=1 // pred_check
      _
    $region19: #{tpu_custom_call.1} parent=1 // pred_check_branch
      %235 = sbr.rel (0) target = $region21
    $region20: #{tpu_custom_call.1} parent=1 // pred_region
      %s237 = ssub.s32 512, 512
      %238 = vsyncadd [#allocation4], %s237
      %s239 = sshll.u32 [#allocation3], 4
      %s240 = int_to_ptr.vmem [resolvable:$true] %s239
      %245 = dma.vmem_to_hbm [thread:$0]  %s240, 512, %s4, [#allocation4], 128, 128, 8
    $region21: #{tpu_custom_call.1} parent=1 // pred_fallthru
      _
    // Predicated region
    $region22: #{tpu_custom_call.1} parent=1 // pred_check
      _
    $region23: #{tpu_custom_call.1} parent=1 // pred_check_branch
      %247 = sbr.rel (0) target = $region25
    $region24: #{tpu_custom_call.1} parent=1 // pred_region
      %248 = dma.done [#allocation4], 512
    $region25: #{tpu_custom_call.1} parent=1 // pred_fallthru
      _
    %249 = vsyncpa [#allocation4], 1

</llo_original>
